<compile_context>
chip_gen: v7x
topology: tpu7x:2x2x1
jax: 0.10.0
libtpu: 0.0.40
codegen_flags: <defaults>
</compile_context>

<pallas_src>
import jax
import jax.numpy as jnp
from jax.experimental import pallas as pl
from jax.experimental.pallas import tpu as pltpu


def _outconv_kernel(x_ref, w_ref, b_ref, o_ref):
    # x_ref: (1, Cin, TS)   input slab, native dtype, channels on sublanes
    # w_ref: (Cout, Cin)    resident weights, same dtype as x
    # b_ref: (Cout, 1)      resident bias, float32
    # o_ref: (1, Cout, TS)  lane-dense output slab
    cin = x_ref.shape[1]
    cout = o_ref.shape[1]
    ts = o_ref.shape[2]
    b = b_ref[...]                                    # (Cout, 1) f32

    if cin > 8:
        # MXU path: contraction is deep enough to feed the systolic array.
        # Native-dtype operands (bf16 x bf16 -> f32 accumulate at full rate);
        # no f32 copy of the input tile is ever materialized.
        acc = jnp.dot(w_ref[...], x_ref[0],
                      preferred_element_type=jnp.float32) + b
    else:
        # Tiny contraction depth: broadcast multiply-adds on the VPU.
        # The kernel is HBM-bound here, so the sublane-sparse accumulator is
        # hidden slack (per review: don't repack). Read one channel row per
        # unrolled iteration straight from the ref.
        acc = jnp.broadcast_to(b, (cout, ts))         # hoisted, single broadcast
        for c in range(cin):                          # static unroll (cin <= 8)
            row = x_ref[0, c:c + 1, :].astype(jnp.float32)        # (1, TS)
            wc = w_ref[:, c:c + 1].astype(jnp.float32)            # (Cout, 1)
            acc = acc + wc * row

    o_ref[0] = acc.astype(o_ref.dtype)


def _pick_spatial_tile(S, cin, cout, in_itemsize, out_itemsize, n_batch,
                       budget_bytes=8 * 1024 * 1024):
    """Largest 128-aligned spatial tile whose double-buffered x/out tiles fit a
    dtype-aware VMEM budget; guarantees >= 2 grid steps when the batch is 1 so
    v7x's two TensorCores both get work."""
    pad8 = lambda c: -(-c // 8) * 8
    # Double-buffered input + output tiles, per spatial lane, real itemsizes.
    per_lane = (pad8(cin) * in_itemsize + pad8(cout) * out_itemsize) * 2
    max_lanes = max(128, (budget_bytes // per_lane) // 128 * 128)

    if S <= max_lanes:
        # Whole spatial extent fits in one slab.
        if n_batch >= 2 or S <= 256:
            return S                       # full-extent block: always legal
        # N == 1 and S large: split so the parallel grid has >= 2 steps (v7x).
        half = -(-S // 2)
        ts = -(-half // 128) * 128         # 128-multiple block (legal when < S)
        return ts if ts < S else S

    # Tiled: prefer an exact 128-multiple divisor (no ragged tail).
    for ts in range(max_lanes, 127, -128):
        if S % ts == 0:
            return ts
    return max_lanes                       # ragged last tile: Pallas masks writes


def out_conv(x, weight, bias):
    """1x1 conv, equivalent to nn.Conv2d(C_in, C_out, kernel_size=1).

    x:      (N, C_in, H, W)   NCHW, like PyTorch
    weight: (C_out, C_in, 1, 1)
    bias:   (C_out,)
    returns (N, C_out, H, W)
    """
    N, Cin, H, W = x.shape
    Cout = weight.shape[0]
    S = H * W

    # Free (metadata-only) reshapes: no transposes, no extra HBM round-trips.
    x3 = x.reshape(N, Cin, S)
    wm = weight.reshape(Cout, Cin).astype(x.dtype)    # native-dtype MXU operand
    bm = bias.reshape(Cout, 1).astype(jnp.float32)    # f32 bias for the epilogue

    itemsize = jnp.dtype(x.dtype).itemsize
    TS = _pick_spatial_tile(S, Cin, Cout, itemsize, itemsize, N)
    # Block-shape legality: spatial block is a 128-multiple or the full extent.
    assert TS == S or TS % 128 == 0, (TS, S)
    grid = (N, pl.cdiv(S, TS))

    # Explicit VMEM budget: 2x (double-buffered x+out tiles) + resident w/b,
    # with 2x headroom, capped at 32 MiB (safe on v5e/v6e/v7x).
    pad8 = lambda c: -(-c // 8) * 8
    pad128 = lambda c: -(-c // 128) * 128
    tile_in = pad8(Cin) * TS * itemsize
    tile_out = pad8(Cout) * TS * itemsize
    w_bytes = pad8(Cout) * pad128(Cin) * jnp.dtype(wm.dtype).itemsize
    b_bytes = pad8(Cout) * 128 * 4
    vmem_need = 2 * (tile_in + tile_out) + 2 * (w_bytes + b_bytes)
    vmem_limit = int(min(max(2 * vmem_need, 16 << 20), 32 << 20))

    out3 = pl.pallas_call(
        _outconv_kernel,
        out_shape=jax.ShapeDtypeStruct((N, Cout, S), x.dtype),
        grid=grid,
        in_specs=[
            pl.BlockSpec((1, Cin, TS), lambda n, s: (n, 0, s)),
            pl.BlockSpec((Cout, Cin), lambda n, s: (0, 0)),   # resident in VMEM
            pl.BlockSpec((Cout, 1), lambda n, s: (0, 0)),     # resident in VMEM
        ],
        out_specs=pl.BlockSpec((1, Cout, TS), lambda n, s: (n, 0, s)),
        compiler_params=pltpu.CompilerParams(
            dimension_semantics=("parallel", "parallel"),
            vmem_limit_bytes=vmem_limit),
        cost_estimate=pl.CostEstimate(
            flops=2 * N * S * Cin * Cout,
            transcendentals=0,
            bytes_accessed=(x3.size * itemsize
                            + wm.size * jnp.dtype(wm.dtype).itemsize
                            + bm.size * 4
                            + N * Cout * S * itemsize)),
    )(x3, wm, bm)

    return out3.reshape(N, Cout, H, W)


if __name__ == "__main__":
    key = jax.random.PRNGKey(0)
    k_x, k_w, k_b, k_x2, k_w2, k_b2 = jax.random.split(key, 6)

    # --- Test 1: tiny channel counts (VPU path), f32, like the module spec ---
    N, Cin, Cout, H, W = 2, 4, 3, 16, 16
    x = jax.random.normal(k_x, (N, Cin, H, W), dtype=jnp.float32)
    bound = 1.0 / jnp.sqrt(float(Cin))
    weight = jax.random.uniform(k_w, (Cout, Cin, 1, 1), jnp.float32,
                                minval=-bound, maxval=bound)
    bias = jax.random.uniform(k_b, (Cout,), jnp.float32,
                              minval=-bound, maxval=bound)

    y = out_conv(x, weight, bias)
    jax.block_until_ready(y)
    ref = jnp.einsum("nchw,oc->nohw", x, weight.reshape(Cout, Cin)) \
        + bias.reshape(1, Cout, 1, 1)
    assert y.shape == (N, Cout, H, W)
    assert jnp.allclose(y, ref, atol=1e-5, rtol=1e-5)

    # --- Test 2: large-Cin / small-Cout (MXU path), bf16, N=1 (grid split) ---
    N2, Cin2, Cout2, H2, W2 = 1, 32, 2, 24, 24
    x2 = jax.random.normal(k_x2, (N2, Cin2, H2, W2), dtype=jnp.float32) \
        .astype(jnp.bfloat16)
    bound2 = 1.0 / jnp.sqrt(float(Cin2))
    w2 = jax.random.uniform(k_w2, (Cout2, Cin2, 1, 1), jnp.float32,
                            minval=-bound2, maxval=bound2).astype(jnp.bfloat16)
    b2 = jax.random.uniform(k_b2, (Cout2,), jnp.float32,
                            minval=-bound2, maxval=bound2)

    y2 = out_conv(x2, w2, b2)
    jax.block_until_ready(y2)
    ref2 = jnp.einsum("nchw,oc->nohw",
                      x2.astype(jnp.float32),
                      w2.reshape(Cout2, Cin2).astype(jnp.float32)) \
        + b2.reshape(1, Cout2, 1, 1)
    assert y2.shape == (N2, Cout2, H2, W2)
    assert jnp.allclose(y2.astype(jnp.float32), ref2, atol=2e-2, rtol=2e-2)

    print("KERNEL_OK")
</pallas_src>

<mosaic_0001>
module attributes {stable_mosaic.version = 11 : i64} {
  func.func @_outconv_kernel(%arg0: i32, %arg1: i32, %arg2: memref<1x4x256xf32, #tpu.memory_space<vmem>>, %arg3: memref<3x4xf32, #tpu.memory_space<vmem>>, %arg4: memref<3x1xf32, #tpu.memory_space<vmem>>, %arg5: memref<1x3x256xf32, #tpu.memory_space<vmem>>) attributes {dimension_semantics = [#tpu.dimension_semantics<parallel>, #tpu.dimension_semantics<parallel>], iteration_bounds = array<i64: 2, 1>, scalar_prefetch = 0 : i64, scratch_operands = 0 : i64, tpu.core_type = #tpu.core_type<tc>, window_params = [{transform_indices = @transform_0, window_bounds = array<i64: 1, 4, 256>}, {pipeline_mode = #tpu.pipeline_mode<synchronous>, transform_indices = @transform_1, window_bounds = array<i64: 3, 4>}, {pipeline_mode = #tpu.pipeline_mode<synchronous>, transform_indices = @transform_2, window_bounds = array<i64: 3, 1>}, {transform_indices = @transform_3, window_bounds = array<i64: 1, 3, 256>}]} {
    %c0 = arith.constant 0 : index
    %c0_0 = arith.constant 0 : index
    %0 = vector.load %arg4[%c0, %c0_0] : memref<3x1xf32, #tpu.memory_space<vmem>>, vector<3x1xf32>
    %1 = vector.shape_cast %0 : vector<3x1xf32> to vector<3x1xf32>
    %2 = vector.broadcast %1 : vector<3x1xf32> to vector<3x256xf32>
    %c0_1 = arith.constant 0 : index
    %c0_2 = arith.constant 0 : index
    %c0_3 = arith.constant 0 : index
    %3 = vector.load %arg2[%c0_1, %c0_2, %c0_3] : memref<1x4x256xf32, #tpu.memory_space<vmem>>, vector<1x1x256xf32>
    %4 = vector.shape_cast %3 : vector<1x1x256xf32> to vector<1x256xf32>
    %c0_4 = arith.constant 0 : index
    %c0_5 = arith.constant 0 : index
    %5 = vector.load %arg3[%c0_4, %c0_5] : memref<3x4xf32, #tpu.memory_space<vmem>>, vector<3x1xf32>
    %6 = vector.broadcast %5 : vector<3x1xf32> to vector<3x256xf32>
    %7 = vector.broadcast %4 : vector<1x256xf32> to vector<3x256xf32>
    %8 = arith.mulf %6, %7 : vector<3x256xf32>
    %9 = arith.addf %2, %8 : vector<3x256xf32>
    %c0_6 = arith.constant 0 : index
    %c1 = arith.constant 1 : index
    %c0_7 = arith.constant 0 : index
    %10 = vector.load %arg2[%c0_6, %c1, %c0_7] : memref<1x4x256xf32, #tpu.memory_space<vmem>>, vector<1x1x256xf32>
    %11 = vector.shape_cast %10 : vector<1x1x256xf32> to vector<1x256xf32>
    %c0_8 = arith.constant 0 : index
    %c1_9 = arith.constant 1 : index
    %12 = vector.load %arg3[%c0_8, %c1_9] : memref<3x4xf32, #tpu.memory_space<vmem>>, vector<3x1xf32>
    %13 = vector.broadcast %12 : vector<3x1xf32> to vector<3x256xf32>
    %14 = vector.broadcast %11 : vector<1x256xf32> to vector<3x256xf32>
    %15 = arith.mulf %13, %14 : vector<3x256xf32>
    %16 = arith.addf %9, %15 : vector<3x256xf32>
    %c0_10 = arith.constant 0 : index
    %c2 = arith.constant 2 : index
    %c0_11 = arith.constant 0 : index
    %17 = vector.load %arg2[%c0_10, %c2, %c0_11] : memref<1x4x256xf32, #tpu.memory_space<vmem>>, vector<1x1x256xf32>
    %18 = vector.shape_cast %17 : vector<1x1x256xf32> to vector<1x256xf32>
    %c0_12 = arith.constant 0 : index
    %c2_13 = arith.constant 2 : index
    %19 = vector.load %arg3[%c0_12, %c2_13] : memref<3x4xf32, #tpu.memory_space<vmem>>, vector<3x1xf32>
    %20 = vector.broadcast %19 : vector<3x1xf32> to vector<3x256xf32>
    %21 = vector.broadcast %18 : vector<1x256xf32> to vector<3x256xf32>
    %22 = arith.mulf %20, %21 : vector<3x256xf32>
    %23 = arith.addf %16, %22 : vector<3x256xf32>
    %c0_14 = arith.constant 0 : index
    %c3 = arith.constant 3 : index
    %c0_15 = arith.constant 0 : index
    %24 = vector.load %arg2[%c0_14, %c3, %c0_15] : memref<1x4x256xf32, #tpu.memory_space<vmem>>, vector<1x1x256xf32>
    %25 = vector.shape_cast %24 : vector<1x1x256xf32> to vector<1x256xf32>
    %c0_16 = arith.constant 0 : index
    %c3_17 = arith.constant 3 : index
    %26 = vector.load %arg3[%c0_16, %c3_17] : memref<3x4xf32, #tpu.memory_space<vmem>>, vector<3x1xf32>
    %27 = vector.broadcast %26 : vector<3x1xf32> to vector<3x256xf32>
    %28 = vector.broadcast %25 : vector<1x256xf32> to vector<3x256xf32>
    %29 = arith.mulf %27, %28 : vector<3x256xf32>
    %30 = arith.addf %23, %29 : vector<3x256xf32>
    %c0_18 = arith.constant 0 : index
    %c0_19 = arith.constant 0 : index
    %c0_20 = arith.constant 0 : index
    %31 = vector.load %arg5[%c0_18, %c0_19, %c0_20] : memref<1x3x256xf32, #tpu.memory_space<vmem>>, vector<1x3x256xf32>
    %32 = vector.shape_cast %31 : vector<1x3x256xf32> to vector<3x256xf32>
    %33 = vector.shape_cast %30 : vector<3x256xf32> to vector<1x3x256xf32>
    tpu.vector_store %arg5[%c0_18, %c0_19, %c0_20], %33 {strides = array<i32>} : memref<1x3x256xf32, #tpu.memory_space<vmem>>, vector<1x3x256xf32>,
    return
  }
  func.func @transform_0(%arg0: i32, %arg1: i32) -> (i32, i32, i32) {
    %c0_i32 = arith.constant 0 : i32
    %c0_i32_0 = arith.constant 0 : i32
    return %arg0, %c0_i32, %arg1 : i32, i32, i32
  }
  func.func @transform_1(%arg0: i32, %arg1: i32) -> (i32, i32) {
    %c0_i32 = arith.constant 0 : i32
    %c0_i32_0 = arith.constant 0 : i32
    %c0_i32_1 = arith.constant 0 : i32
    return %c0_i32, %c0_i32_0 : i32, i32
  }
  func.func @transform_2(%arg0: i32, %arg1: i32) -> (i32, i32) {
    %c0_i32 = arith.constant 0 : i32
    %c0_i32_0 = arith.constant 0 : i32
    %c0_i32_1 = arith.constant 0 : i32
    return %c0_i32, %c0_i32_0 : i32, i32
  }
  func.func @transform_3(%arg0: i32, %arg1: i32) -> (i32, i32, i32) {
    %c0_i32 = arith.constant 0 : i32
    %c0_i32_0 = arith.constant 0 : i32
    return %arg0, %c0_i32, %arg1 : i32, i32, i32
  }
}

</mosaic_0001>

<llo_original>
// kernel: tpu_custom_call.1
$region0: #{tpu_custom_call.1}
  #allocation0 [shape = 'u32[]', space=smem, size = 0x4, offset = 0x4, fixed_abs, tag = 'smem constant byte address 0x4 - core index']
  #allocation1 [shape = 'u32[144,128]{1,0:T(1,128)}', space=vmem, size = 0x12000, scoped, tag = 'internal scratch']
  %s0 = inlined_call_operand.hbm [shape: f32[2,4,256], index: 0, kind: input, shape index: {}]
  %s1 = inlined_call_operand.vmem [shape: f32[3,4], index: 1, kind: input, shape index: {}]
  %s2 = inlined_call_operand.vmem [shape: f32[3,1], index: 2, kind: input, shape index: {}]
  %s3 = inlined_call_operand.vmem [shape: f32[2,3,256], index: 3, kind: output, shape index: {}]
  %s4 = sld [smem:[#allocation0]]
  $region49: #{tpu_custom_call.1} parent=0
    _
  %s6 = ssub.s32 1, %s4
  %s7 = scalar_select 0, %s6, %s4
  $region1: #{tpu_custom_call.1} parent=0
    #allocation2 [shape = 'u8[8192]{0}', space=vmem, size = 0x2000, scoped, tag = 'input window, operand 0']
    #allocation3 [shape = 's32[2]{0}', space=sflag, size = 0x8, scoped, tag = 'scoped memory for tpu_custom_call.1']
    %8 = vsyncpa [#allocation3], 0
    %s9 = scalar_lea.sflag [#allocation3], 1
    %10 = vsyncpa %s9, 0
    loop: start=0, step=1, limit=4
    $region2: #{tpu_custom_call.1} parent=1 // loop_pre_header
      _
    $region3: #{tpu_custom_call.1} parent=1 // loop_header
      %s12 = sphi 0, %s16
      %p13 = scmp.ge.s32.totalorder %s12, 4
      %s19 = sphi 0, %s31
      %s20 = sphi 0, %s27
      %s21 = sphi 0, %s19
      %s22 = sphi 0, %s20
      %s23 = sphi 0, %s21
      %s24 = sphi 0, %s22
      %s36 = sphi 0, %s38
      %s39 = sphi 0, %s36
      %s40 = sphi 0, %s39
      %s56 = sphi 0, %s40
      %s60 = sphi 0, %s60
      %s62 = sphi 0, %s60
      %s63 = sphi 0, %s62
      %s77 = sphi 0, %s63
      %s81 = sphi 0, %s81
      %s83 = sphi 0, %s81
      %s84 = sphi 0, %s83
      %s98 = sphi 0, %s84
      %s106 = sphi 0, %s108
      %s109 = sphi 0, %s106
      %s110 = sphi 0, %s109
      %s126 = sphi 0, %s110
    $region4: #{tpu_custom_call.1} parent=1 // loop_header_branch
      %15 = sbr.rel (%p13) target = $region8
    $region5: #{tpu_custom_call.1} parent=1 // loop_body
      %s17 = ssub.s32 %s12, 1
      %s18 = ssub.s32 %s12, 2
      %s25 = sadd.s32 1, %s20
      %p26 = scmp.ge.s32.totalorder %s25, 1
      %s27 = scalar_select %p26, 0, %s25
      %s28 = sadd.s32 1, %s19
      %s29 = scalar_select %p26, %s28, %s19
      %p30 = scmp.ge.s32.totalorder %s29, 2
      %s31 = scalar_select %p30, 0, %s29
      %s32 = ssub.s32 %s19, %s31
      %s33 = ssub.s32 %s20, %s27
      %s34 = sor.u32 %s32, %s33
      %p35 = scmp.eq.s32.totalorder %s34, 0
      %s37 = sadd.s32 %s36, 1
      %s38 = scalar_select %p35, %s36, %s37
      %p41 = pneg %p35
      %p42 = scmp.eq.s32.totalorder %s12, 1
      %p43 = por %p41, %p42
      %p44 = scmp.ne.s32.totalorder %s36, %s39
      %p45 = scmp.eq.s32.totalorder %s12, 0
      %p46 = por %p44, %p45
      %p47 = scmp.ne.s32.totalorder %s36, %s39
      %p48 = scmp.eq.s32.totalorder %s17, 1
      %p49 = por %p47, %p48
      %p50 = scmp.ne.s32.totalorder %s39, %s40
      %p51 = scmp.eq.s32.totalorder %s17, 0
      %p52 = por %p50, %p51
      %p53 = scmp.ne.s32.totalorder %s39, %s40
      %p54 = scmp.eq.s32.totalorder %s18, 1
      %p55 = por %p53, %p54
      %p57 = scmp.ne.s32.totalorder %s40, %s56
      %p58 = scmp.eq.s32.totalorder %s18, 0
      %p59 = por %p57, %p58
      %s61 = sadd.s32 %s60, 1
      %p64 = scmp.eq.s32.totalorder %s12, 1
      %p65 = scmp.ne.s32.totalorder %s60, %s62
      %p66 = scmp.eq.s32.totalorder %s12, 0
      %p67 = por %p65, %p66
      %p68 = scmp.ne.s32.totalorder %s60, %s62
      %p69 = scmp.eq.s32.totalorder %s17, 1
      %p70 = por %p68, %p69
      %p71 = scmp.ne.s32.totalorder %s62, %s63
      %p72 = scmp.eq.s32.totalorder %s17, 0
      %p73 = por %p71, %p72
      %p74 = scmp.ne.s32.totalorder %s62, %s63
      %p75 = scmp.eq.s32.totalorder %s18, 1
      %p76 = por %p74, %p75
      %p78 = scmp.ne.s32.totalorder %s63, %s77
      %p79 = scmp.eq.s32.totalorder %s18, 0
      %p80 = por %p78, %p79
      %s82 = sadd.s32 %s81, 1
      %p85 = scmp.eq.s32.totalorder %s12, 1
      %p86 = scmp.ne.s32.totalorder %s81, %s83
      %p87 = scmp.eq.s32.totalorder %s12, 0
      %p88 = por %p86, %p87
      %p89 = scmp.ne.s32.totalorder %s81, %s83
      %p90 = scmp.eq.s32.totalorder %s17, 1
      %p91 = por %p89, %p90
      %p92 = scmp.ne.s32.totalorder %s83, %s84
      %p93 = scmp.eq.s32.totalorder %s17, 0
      %p94 = por %p92, %p93
      %p95 = scmp.ne.s32.totalorder %s83, %s84
      %p96 = scmp.eq.s32.totalorder %s18, 1
      %p97 = por %p95, %p96
      %p99 = scmp.ne.s32.totalorder %s84, %s98
      %p100 = scmp.eq.s32.totalorder %s18, 0
      %p101 = por %p99, %p100
      %s102 = ssub.s32 %s19, %s31
      %s103 = ssub.s32 %s20, %s27
      %s104 = sor.u32 %s102, %s103
      %p105 = scmp.eq.s32.totalorder %s104, 0
      %s107 = sadd.s32 %s106, 1
      %s108 = scalar_select %p105, %s106, %s107
      %p111 = pneg %p105
      %p112 = scmp.eq.s32.totalorder %s12, 1
      %p113 = por %p111, %p112
      %p114 = scmp.ne.s32.totalorder %s106, %s109
      %p115 = scmp.eq.s32.totalorder %s12, 0
      %p116 = por %p114, %p115
      %p117 = scmp.ne.s32.totalorder %s106, %s109
      %p118 = scmp.eq.s32.totalorder %s17, 1
      %p119 = por %p117, %p118
      %p120 = scmp.ne.s32.totalorder %s109, %s110
      %p121 = scmp.eq.s32.totalorder %s17, 0
      %p122 = por %p120, %p121
      %p123 = scmp.ne.s32.totalorder %s109, %s110
      %p124 = scmp.eq.s32.totalorder %s18, 1
      %p125 = por %p123, %p124
      %p127 = scmp.ne.s32.totalorder %s110, %s126
      %p128 = scmp.eq.s32.totalorder %s18, 0
      %p129 = por %p127, %p128
      %p130 = scmp.le.s32.totalorder 1, %s12
      %p131 = scmp.lt.s32.totalorder %s12, 3
      %p132 = pnand %p130, %p131
      %p133 = pneg %p132
      // Predicated region
      $region9: #{tpu_custom_call.1} parent=5 // pred_check
        _
      $region10: #{tpu_custom_call.1} parent=5 // pred_check_branch
        %135 = sbr.rel (%p132) target = $region12
      $region11: #{tpu_custom_call.1} parent=5 // pred_region
        %s136 = ssub.s32 %s12, 1
        // Predicated region
        $region13: #{tpu_custom_call.1} parent=11 // pred_check
          %p137 = pneg %p73
        $region14: #{tpu_custom_call.1} parent=11 // pred_check_branch
          %139 = sbr.rel (%p137) target = $region16
        $region15: #{tpu_custom_call.1} parent=11 // pred_region
          _
        $region16: #{tpu_custom_call.1} parent=11 // pred_fallthru
          _
        // Predicated region
        $region17: #{tpu_custom_call.1} parent=11 // pred_check
          %p140 = pneg %p94
        $region18: #{tpu_custom_call.1} parent=11 // pred_check_branch
          %142 = sbr.rel (%p140) target = $region20
        $region19: #{tpu_custom_call.1} parent=11 // pred_region
          _
        $region20: #{tpu_custom_call.1} parent=11 // pred_fallthru
          _
      $region12: #{tpu_custom_call.1} parent=5 // pred_fallthru
        _
      %p143 = scmp.lt.s32.totalorder %s12, 2
      // Predicated region
      $region21: #{tpu_custom_call.1} parent=5 // pred_check
        %p144 = pneg %p143
      $region22: #{tpu_custom_call.1} parent=5 // pred_check_branch
        %146 = sbr.rel (%p144) target = $region24
      $region23: #{tpu_custom_call.1} parent=5 // pred_region
        // Predicated region
        $region25: #{tpu_custom_call.1} parent=23 // pred_check
          %p147 = pneg %p46
        $region26: #{tpu_custom_call.1} parent=23 // pred_check_branch
          %149 = sbr.rel (%p147) target = $region28
        $region27: #{tpu_custom_call.1} parent=23 // pred_region
          %s150 = sand.u32 %s36, 1
          %s151 = scalar_lea.sflag [#allocation3], %s150
          %s152 = sand.u32 %s36, 1
          %s153 = smul.addr %s152, 8
          %s154 = scalar_lea.vmem [#allocation2], %s153
          %s155 = smul.u32 2, %s20
          %s157 = ssub.s32 128, 128
          %158 = vsyncadd %s151, %s157
          %s159 = smul.addr %s19, 2
          %s160 = sadd.s32 %s155, %s159
          %s161 = smul.addr %s160, 64
          %s162 = scalar_lea.hbm %s0, %s161
          %s164 = sshll.u32 %s154, 4
          %s165 = int_to_ptr.vmem [resolvable:$true] %s164
          %167 = dma.hbm_to_vmem [thread:$0]  %s162, 128, %s165, %s151
        $region28: #{tpu_custom_call.1} parent=23 // pred_fallthru
          _
      $region24: #{tpu_custom_call.1} parent=5 // pred_fallthru
        _
      %p168 = scmp.le.s32.totalorder 1, %s12
      %p169 = scmp.lt.s32.totalorder %s12, 3
      %p170 = pnand %p168, %p169
      %p171 = pneg %p170
      // Predicated region
      $region29: #{tpu_custom_call.1} parent=5 // pred_check
        _
      $region30: #{tpu_custom_call.1} parent=5 // pred_check_branch
        %173 = sbr.rel (%p170) target = $region32
      $region31: #{tpu_custom_call.1} parent=5 // pred_region
        %s174 = ssub.s32 %s12, 1
        %s175 = sand.u32 %s39, 1
        %s176 = scalar_lea.sflag [#allocation3], %s175
        %s177 = sand.u32 %s39, 1
        %s178 = smul.addr %s177, 8
        %s179 = scalar_lea.vmem [#allocation2], %s178
        // Predicated region
        $region33: #{tpu_custom_call.1} parent=31 // pred_check
          %p180 = pneg %p52
        $region34: #{tpu_custom_call.1} parent=31 // pred_check_branch
          %182 = sbr.rel (%p180) target = $region36
        $region35: #{tpu_custom_call.1} parent=31 // pred_region
          %183 = dma.done %s176, 128
        $region36: #{tpu_custom_call.1} parent=31 // pred_fallthru
          _
        %s184 = sand.u32 %s39, 1
        %s185 = scalar_lea.sflag [#allocation3], %s184
        %s186 = sand.u32 %s39, 1
        %s187 = smul.addr %s186, 8
        %s188 = scalar_lea.vmem [#allocation2], %s187
        %p189 = pneg %p52
        %p190 = pneg %p49
        %p191 = pneg %p73
        %p192 = pneg %p70
        %p193 = pneg %p94
        %p194 = pneg %p91
        %p195 = pneg %p122
        %p196 = pneg %p119
        %s197 = smul.u32 2, %s22
        %p198 = scmp.lt.s32.totalorder %s21, 1
        %s199 = scalar_select %p198, %s21, 1
        %p200 = scmp.lt.s32.totalorder %s197, 1
        %s201 = scalar_select %p200, %s197, 1
        %s202 = smul.addr %s199, 2
        %s203 = sadd.s32 %s201, %s202
        %s204 = smul.addr %s203, 4
        %s205 = scalar_lea.vmem %s3, %s204
        %s206 = smul.u32 2, %s22
        %s207 = smul.u32 2, %s22
        %p208 = scmp.lt.s32.totalorder %s21, 1
        %s209 = scalar_select %p208, %s21, 1
        %p210 = scmp.lt.s32.totalorder %s207, 1
        %s211 = scalar_select %p210, %s207, 1
        %s212 = smul.addr %s209, 2
        %s213 = sadd.s32 %s211, %s212
        %s214 = smul.addr %s213, 4
        %s215 = scalar_lea.vmem %s3, %s214
        %s216 = smul.u32 2, %s22
        %v217 = vld [vmem:[%s2] sm:$0x7]
        %219 = vset.pattern.permute.xlu0 0
        %220 = vperm.xlu0 %219, %v217
        %v221 = vpop.permute.xlu0 %220
        %v223 = vld [vmem:[%s179] ss:$4 sm:$0x3]
        %v224 = vld [vmem:[%s1] sm:$0x7]
        %226 = vset.pattern.permute.xlu0 0
        %227 = vperm.xlu0 %226, %v224
        %v228 = vpop.permute.xlu0 %227
        %v231 = vlaneseq
        %v232 = vshrl.u32 %v231, 7
        %v233 = vsub.s32 0, %v232
        %v234 = vrot.slane %v223, %v233
        %v235 = vlaneseq
        %v236 = vshrl.u32 %v235, 7
        %v237 = vsub.s32 1, %v236
        %v238 = vrot.slane %v223, %v237
        %v241 = vmul.f32 %v228, %v234
        %v242 = vmul.f32 %v228, %v238
        %v243 = vadd.f32 %v221, %v241
        %v244 = vadd.f32 %v221, %v242
        %s245 = scalar_lea.vmem %s179, 1 [#allocation2]
        %v246 = vld [vmem:[%s245] ss:$4 sm:$0x3]
        %247 = vset.pattern.permute.xlu0 1
        %248 = vperm.xlu0 %247, %v224
        %v249 = vpop.permute.xlu0 %248
        %v252 = vlaneseq
        %v253 = vshrl.u32 %v252, 7
        %v254 = vsub.s32 0, %v253
        %v255 = vrot.slane %v246, %v254
        %v256 = vlaneseq
        %v257 = vshrl.u32 %v256, 7
        %v258 = vsub.s32 1, %v257
        %v259 = vrot.slane %v246, %v258
        %v262 = vmul.f32 %v249, %v255
        %v263 = vmul.f32 %v249, %v259
        %v264 = vadd.f32 %v243, %v262
        %v265 = vadd.f32 %v244, %v263
        %s266 = scalar_lea.vmem %s179, 2 [#allocation2]
        %v267 = vld [vmem:[%s266] ss:$4 sm:$0x3]
        %268 = vset.pattern.permute.xlu0 2
        %269 = vperm.xlu0 %268, %v224
        %v270 = vpop.permute.xlu0 %269
        %v273 = vlaneseq
        %v274 = vshrl.u32 %v273, 7
        %v275 = vsub.s32 0, %v274
        %v276 = vrot.slane %v267, %v275
        %v277 = vlaneseq
        %v278 = vshrl.u32 %v277, 7
        %v279 = vsub.s32 1, %v278
        %v280 = vrot.slane %v267, %v279
        %v283 = vmul.f32 %v270, %v276
        %v284 = vmul.f32 %v270, %v280
        %v285 = vadd.f32 %v264, %v283
        %v286 = vadd.f32 %v265, %v284
        %s287 = scalar_lea.vmem %s179, 3 [#allocation2]
        %v288 = vld [vmem:[%s287] ss:$4 sm:$0x3]
        %289 = vset.pattern.permute.xlu0 3
        %290 = vperm.xlu0 %289, %v224
        %v291 = vpop.permute.xlu0 %290
        %v294 = vlaneseq
        %v295 = vshrl.u32 %v294, 7
        %v296 = vsub.s32 0, %v295
        %v297 = vrot.slane %v288, %v296
        %v298 = vlaneseq
        %v299 = vshrl.u32 %v298, 7
        %v300 = vsub.s32 1, %v299
        %v301 = vrot.slane %v288, %v300
        %v304 = vmul.f32 %v291, %v297
        %v305 = vmul.f32 %v291, %v301
        %v306 = vadd.f32 %v285, %v304
        %v307 = vadd.f32 %v286, %v305
        %v310 = vcombine.low %v306, %v307
        %312 = vst [vmem:[%s215] sm:$0x77] %v310
        %s313 = smul.u32 2, %s22
        %p314 = scmp.lt.s32.totalorder %s21, 1
        %s315 = scalar_select %p314, %s21, 1
        %p316 = scmp.lt.s32.totalorder %s313, 1
        %s317 = scalar_select %p316, %s313, 1
        %s318 = smul.addr %s315, 2
        %s319 = sadd.s32 %s317, %s318
        %s320 = smul.addr %s319, 4
        %s321 = scalar_lea.vmem %s3, %s320
        // Predicated region
        $region37: #{tpu_custom_call.1} parent=31 // pred_check
          %p322 = pneg %p119
        $region38: #{tpu_custom_call.1} parent=31 // pred_check_branch
          %324 = sbr.rel (%p322) target = $region40
        $region39: #{tpu_custom_call.1} parent=31 // pred_region
          %s325 = smul.u32 2, %s22
        $region40: #{tpu_custom_call.1} parent=31 // pred_fallthru
          _
      $region32: #{tpu_custom_call.1} parent=5 // pred_fallthru
        _
      %p326 = scmp.le.s32.totalorder 2, %s12
      // Predicated region
      $region41: #{tpu_custom_call.1} parent=5 // pred_check
        %p327 = pneg %p326
      $region42: #{tpu_custom_call.1} parent=5 // pred_check_branch
        %329 = sbr.rel (%p327) target = $region44
      $region43: #{tpu_custom_call.1} parent=5 // pred_region
        %s330 = ssub.s32 %s12, 2
        // Predicated region
        $region45: #{tpu_custom_call.1} parent=43 // pred_check
          %p331 = pneg %p125
        $region46: #{tpu_custom_call.1} parent=43 // pred_check_branch
          %333 = sbr.rel (%p331) target = $region48
        $region47: #{tpu_custom_call.1} parent=43 // pred_region
          %s334 = smul.u32 2, %s24
          %p335 = scmp.lt.s32.totalorder %s23, 1
          %s336 = scalar_select %p335, %s23, 1
          %p337 = scmp.lt.s32.totalorder %s334, 1
          %s338 = scalar_select %p337, %s334, 1
          %s339 = smul.addr %s336, 2
          %s340 = sadd.s32 %s338, %s339
          %s341 = smul.addr %s340, 4
          %s342 = scalar_lea.vmem %s3, %s341
        $region48: #{tpu_custom_call.1} parent=43 // pred_fallthru
          _
      $region44: #{tpu_custom_call.1} parent=5 // pred_fallthru
        _
    $region6: #{tpu_custom_call.1} parent=1 // loop_footer
      %s16 = sadd.s32 1, %s12
    $region7: #{tpu_custom_call.1} parent=1 // loop_footer_branch
      %11 = sbr.rel target = $region3
    $region8: #{tpu_custom_call.1} parent=1 // loop_exit
      _
    %343 = vsyncpa [#allocation3], 1
    %s344 = scalar_lea.sflag [#allocation3], 1
    %345 = vsyncpa %s344, 1

</llo_original>
